<compile_context>
chip_gen: v5e
topology: v5e:2x2
jax: 0.10.0
libtpu: 0.0.40
codegen_flags: <defaults>
</compile_context>

<pallas_src>
import functools

import jax
import jax.numpy as jnp
from jax import lax
from jax.experimental import pallas as pl
from jax.experimental.pallas import tpu as pltpu


def _resblock_kernel(x_ref, B1_ref, b1_ref, B2_ref, b2_ref, alpha_ref,
                     o_ref, pad_ref, *, H, WC):
    """One image per grid step; activations in merged (H, W*C) layout.

    x_ref:    (1, H, WC)   conv input == residual input
    B1_ref:   (3*WC, WC)   conv1 weight, block-Toeplitz over the width axis
    b1_ref:   (1, WC)      conv1 bias tiled over width
    B2_ref:   (3*WC, WC)   conv2 weight
    b2_ref:   (1, WC)      conv2 bias tiled over width
    alpha_ref:(1,)         PReLU slope (SMEM scalar)
    o_ref:    (1, H, WC)
    pad_ref:  (H+2, WC)    VMEM scratch: row-padded activation (shared by both convs)
    """
    x2d = x_ref[0]  # (H, WC) float32

    # Zero only the 1-row halo (rows 0 and H+1). Interior rows 1..H are fully
    # overwritten before every read, so the halo stays zero for both convs.
    zero_row = jnp.zeros((1, WC), jnp.float32)
    pad_ref[0:1, :] = zero_row
    pad_ref[H + 1:H + 2, :] = zero_row

    def conv3x3(v, B_ref, bias_row):
        # Write the activation into the interior; vertical taps become 3 static
        # row-window loads fed straight into the MXU (no full-buffer reload).
        pad_ref[1:H + 1, :] = v
        # Bias folded into the accumulator init (hoisted broadcast).
        acc = jnp.broadcast_to(bias_row, (H, WC)).astype(jnp.float32)
        for t in range(3):  # vertical taps: rows y-1, y, y+1
            acc = acc + jnp.dot(pad_ref[t:t + H, :],
                                B_ref[t * WC:(t + 1) * WC, :],
                                preferred_element_type=jnp.float32)
        return acc

    alpha = alpha_ref[0]

    h = conv3x3(x2d, B1_ref, b1_ref[...])        # conv1 + bias
    h = jnp.where(h > 0, h, alpha * h)           # PReLU (single shared slope)

    y = conv3x3(h, B2_ref, b2_ref[...])          # conv2 + bias
    o_ref[0] = (y + x2d).astype(o_ref.dtype)     # residual add


def _conv3x3_to_row_toeplitz(w, W):
    """HWIO (3, 3, Cin, Cout) -> (3*W*Cin, W*Cout) block-Toeplitz over width.

    B[(ky*W + wi)*Cin + ci, wo*Cout + co] = w[ky, wi - wo + 1, ci, co] if |wi-wo| <= 1
                                            0                          otherwise
    so one dot over K = W*Cin per vertical tap performs all 3 horizontal taps plus the
    channel contraction; horizontal zero-padding falls out because out-of-range input
    columns simply never appear in the contraction.  (One-time weight repack; runs in
    the wrapper, not per step.)
    """
    ky, kx, Cin, Cout = w.shape
    wi = jnp.arange(W)[:, None]                       # input column index
    wo = jnp.arange(W)[None, :]                       # output column index
    diff = wi - wo                                    # horizontal tap offset
    sel = w[:, jnp.clip(diff + 1, 0, kx - 1), :, :]   # (3, W, W, Cin, Cout)
    sel = jnp.where((jnp.abs(diff) <= 1)[None, :, :, None, None], sel, 0.0)
    # (ky, wi, wo, ci, co) -> (ky, wi, ci, wo, co) -> (3*W*Cin, W*Cout)
    return jnp.transpose(sel, (0, 1, 3, 2, 4)).reshape(ky * W * Cin, W * Cout)


def resblock_pallas(x, w1, b1, w2, b2, alpha):
    """x: (N, H, W, C) float32 NHWC; weights HWIO; returns (N, H, W, C)."""
    N, H, W, Cin = x.shape
    Cout = w1.shape[-1]
    assert Cin == Cout, "residual add requires in_ch == out_ch"
    WC = W * Cout

    # Layout plumbing only: free row-major reshape + one-time weight/bias repack.
    x2d = x.reshape(N, H, W * Cin)                    # merged width-channel lanes
    B1 = _conv3x3_to_row_toeplitz(w1, W)              # (3*WC, WC)
    B2 = _conv3x3_to_row_toeplitz(w2, W)              # (3*WC, WC)
    b1r = jnp.tile(b1.reshape(1, Cout), (1, W))       # (1, WC)
    b2r = jnp.tile(b2.reshape(1, Cout), (1, W))       # (1, WC)

    kernel = functools.partial(_resblock_kernel, H=H, WC=WC)

    out2d = pl.pallas_call(
        kernel,
        out_shape=jax.ShapeDtypeStruct((N, H, WC), x.dtype),
        grid_spec=pltpu.PrefetchScalarGridSpec(
            num_scalar_prefetch=0,
            grid=(N,),
            in_specs=[
                pl.BlockSpec((1, H, WC), lambda n: (n, 0, 0)),        # x (conv + residual)
                pl.BlockSpec((3 * WC, WC), lambda n: (0, 0)),         # B1 (invariant)
                pl.BlockSpec((1, WC), lambda n: (0, 0)),              # b1
                pl.BlockSpec((3 * WC, WC), lambda n: (0, 0)),         # B2 (invariant)
                pl.BlockSpec((1, WC), lambda n: (0, 0)),              # b2
                pl.BlockSpec(memory_space=pltpu.MemorySpace.SMEM),    # alpha
            ],
            out_specs=pl.BlockSpec((1, H, WC), lambda n: (n, 0, 0)),
            scratch_shapes=[pltpu.VMEM((H + 2, WC), jnp.float32)],
        ),
        compiler_params=pltpu.CompilerParams(
            dimension_semantics=("parallel",)),
    )(x2d, B1, b1r, B2, b2r, alpha)

    return out2d.reshape(N, H, W, Cout)


def resblock_reference(x, w1, b1, w2, b2, alpha):
    """Plain-JAX reference (NHWC, HWIO), matching PyTorch ResBlock semantics."""
    dn = ('NHWC', 'HWIO', 'NHWC')
    h = lax.conv_general_dilated(x, w1, (1, 1), 'SAME', dimension_numbers=dn)
    h = h + b1.reshape(1, 1, 1, -1)
    h = jnp.where(h > 0, h, alpha[0] * h)
    h = lax.conv_general_dilated(h, w2, (1, 1), 'SAME', dimension_numbers=dn)
    h = h + b2.reshape(1, 1, 1, -1)
    return h + x


if __name__ == "__main__":
    N, H, W, C = 2, 16, 16, 4  # in_ch == out_ch == 4

    key = jax.random.PRNGKey(0)
    kx, kw1, kb1, kw2, kb2 = jax.random.split(key, 5)

    x = jax.random.normal(kx, (N, H, W, C), dtype=jnp.float32)
    w1 = 0.1 * jax.random.normal(kw1, (3, 3, C, C), dtype=jnp.float32)
    b1 = 0.1 * jax.random.normal(kb1, (1, C), dtype=jnp.float32)
    w2 = 0.1 * jax.random.normal(kw2, (3, 3, C, C), dtype=jnp.float32)
    b2 = 0.1 * jax.random.normal(kb2, (1, C), dtype=jnp.float32)
    alpha = jnp.array([0.25], dtype=jnp.float32)  # nn.PReLU() default init

    out = resblock_pallas(x, w1, b1, w2, b2, alpha)
    out = jax.block_until_ready(out)

    ref = resblock_reference(x, w1, b1, w2, b2, alpha)
    assert out.shape == (N, H, W, C)
    assert jnp.allclose(out, ref, atol=1e-2, rtol=1e-2), (
        f"max abs diff {jnp.max(jnp.abs(out - ref))}")

    print("KERNEL_OK")
</pallas_src>

<mosaic_0001>
module attributes {stable_mosaic.version = 11 : i64} {
  func.func @_resblock_kernel(%arg0: i32, %arg1: memref<1x16x64xf32, #tpu.memory_space<vmem>>, %arg2: memref<192x64xf32, #tpu.memory_space<vmem>>, %arg3: memref<1x64xf32, #tpu.memory_space<vmem>>, %arg4: memref<192x64xf32, #tpu.memory_space<vmem>>, %arg5: memref<1x64xf32, #tpu.memory_space<vmem>>, %arg6: memref<1xf32, #tpu.memory_space<smem>>, %arg7: memref<1x16x64xf32, #tpu.memory_space<vmem>>, %arg8: memref<18x64xf32, #tpu.memory_space<vmem>>) attributes {dimension_semantics = [#tpu.dimension_semantics<parallel>], iteration_bounds = array<i64: 2>, scalar_prefetch = 0 : i64, scratch_operands = 1 : i64, tpu.core_type = #tpu.core_type<tc>, window_params = [{transform_indices = @transform_0, window_bounds = array<i64: 1, 16, 64>}, {pipeline_mode = #tpu.pipeline_mode<synchronous>, transform_indices = @transform_1, window_bounds = array<i64: 192, 64>}, {pipeline_mode = #tpu.pipeline_mode<synchronous>, transform_indices = @transform_2, window_bounds = array<i64: 1, 64>}, {pipeline_mode = #tpu.pipeline_mode<synchronous>, transform_indices = @transform_3, window_bounds = array<i64: 192, 64>}, {pipeline_mode = #tpu.pipeline_mode<synchronous>, transform_indices = @transform_4, window_bounds = array<i64: 1, 64>}, {transform_indices = @transform_5, window_bounds = array<i64: 1>}, {transform_indices = @transform_6, window_bounds = array<i64: 1, 16, 64>}]} {
    %c0 = arith.constant 0 : index
    %c0_0 = arith.constant 0 : index
    %c0_1 = arith.constant 0 : index
    %0 = vector.load %arg1[%c0, %c0_0, %c0_1] : memref<1x16x64xf32, #tpu.memory_space<vmem>>, vector<1x16x64xf32>
    %1 = vector.shape_cast %0 : vector<1x16x64xf32> to vector<16x64xf32>
    %cst = arith.constant 0.000000e+00 : f32
    %2 = vector.broadcast %cst : f32 to vector<1x64xf32>
    %c0_2 = arith.constant 0 : index
    %c0_3 = arith.constant 0 : index
    %3 = vector.load %arg8[%c0_2, %c0_3] : memref<18x64xf32, #tpu.memory_space<vmem>>, vector<1x64xf32>
    tpu.vector_store %arg8[%c0_2, %c0_3], %2 {strides = array<i32>} : memref<18x64xf32, #tpu.memory_space<vmem>>, vector<1x64xf32>,
    %c17 = arith.constant 17 : index
    %c0_4 = arith.constant 0 : index
    %4 = vector.load %arg8[%c17, %c0_4] : memref<18x64xf32, #tpu.memory_space<vmem>>, vector<1x64xf32>
    tpu.vector_store %arg8[%c17, %c0_4], %2 {strides = array<i32>} : memref<18x64xf32, #tpu.memory_space<vmem>>, vector<1x64xf32>,
    %c0_5 = arith.constant 0 : index
    %5 = memref.load %arg6[%c0_5] : memref<1xf32, #tpu.memory_space<smem>>
    %c0_6 = arith.constant 0 : index
    %c0_7 = arith.constant 0 : index
    %6 = vector.load %arg3[%c0_6, %c0_7] : memref<1x64xf32, #tpu.memory_space<vmem>>, vector<1x64xf32>
    %c1 = arith.constant 1 : index
    %c0_8 = arith.constant 0 : index
    %7 = vector.load %arg8[%c1, %c0_8] : memref<18x64xf32, #tpu.memory_space<vmem>>, vector<16x64xf32>
    tpu.vector_store %arg8[%c1, %c0_8], %1 {strides = array<i32>} : memref<18x64xf32, #tpu.memory_space<vmem>>, vector<16x64xf32>,
    %8 = vector.shape_cast %6 : vector<1x64xf32> to vector<1x64xf32>
    %9 = vector.broadcast %8 : vector<1x64xf32> to vector<16x64xf32>
    %c0_9 = arith.constant 0 : index
    %c0_10 = arith.constant 0 : index
    %10 = vector.load %arg8[%c0_9, %c0_10] : memref<18x64xf32, #tpu.memory_space<vmem>>, vector<16x64xf32>
    %c0_11 = arith.constant 0 : index
    %c0_12 = arith.constant 0 : index
    %11 = vector.load %arg2[%c0_11, %c0_12] : memref<192x64xf32, #tpu.memory_space<vmem>>, vector<64x64xf32>
    %cst_13 = arith.constant dense<0.000000e+00> : vector<16x64xf32>
    %12 = tpu.matmul %10, %11, %cst_13 {dimension_numbers = #tpu.dot_dimension_numbers<[1], [0], [0], [1], [0, 0, 1, 1], [], []>} : vector<16x64xf32>, vector<64x64xf32>, vector<16x64xf32> -> vector<16x64xf32>
    %13 = arith.addf %9, %12 : vector<16x64xf32>
    %c1_14 = arith.constant 1 : index
    %c0_15 = arith.constant 0 : index
    %14 = vector.load %arg8[%c1_14, %c0_15] : memref<18x64xf32, #tpu.memory_space<vmem>>, vector<16x64xf32>
    %c64 = arith.constant 64 : index
    %c0_16 = arith.constant 0 : index
    %15 = vector.load %arg2[%c64, %c0_16] : memref<192x64xf32, #tpu.memory_space<vmem>>, vector<64x64xf32>
    %cst_17 = arith.constant dense<0.000000e+00> : vector<16x64xf32>
    %16 = tpu.matmul %14, %15, %cst_17 {dimension_numbers = #tpu.dot_dimension_numbers<[1], [0], [0], [1], [0, 0, 1, 1], [], []>} : vector<16x64xf32>, vector<64x64xf32>, vector<16x64xf32> -> vector<16x64xf32>
    %17 = arith.addf %13, %16 : vector<16x64xf32>
    %c2 = arith.constant 2 : index
    %c0_18 = arith.constant 0 : index
    %18 = vector.load %arg8[%c2, %c0_18] : memref<18x64xf32, #tpu.memory_space<vmem>>, vector<16x64xf32>
    %c128 = arith.constant 128 : index
    %c0_19 = arith.constant 0 : index
    %19 = vector.load %arg2[%c128, %c0_19] : memref<192x64xf32, #tpu.memory_space<vmem>>, vector<64x64xf32>
    %cst_20 = arith.constant dense<0.000000e+00> : vector<16x64xf32>
    %20 = tpu.matmul %18, %19, %cst_20 {dimension_numbers = #tpu.dot_dimension_numbers<[1], [0], [0], [1], [0, 0, 1, 1], [], []>} : vector<16x64xf32>, vector<64x64xf32>, vector<16x64xf32> -> vector<16x64xf32>
    %21 = arith.addf %17, %20 : vector<16x64xf32>
    %cst_21 = arith.constant 0.000000e+00 : f32
    %22 = vector.broadcast %cst_21 : f32 to vector<16x64xf32>
    %23 = arith.cmpf ogt, %21, %22 : vector<16x64xf32>
    %24 = vector.broadcast %5 : f32 to vector<16x64xf32>
    %25 = arith.mulf %24, %21 : vector<16x64xf32>
    %26 = arith.select %23, %21, %25 : vector<16x64xi1>, vector<16x64xf32>
    %c0_22 = arith.constant 0 : index
    %c0_23 = arith.constant 0 : index
    %27 = vector.load %arg5[%c0_22, %c0_23] : memref<1x64xf32, #tpu.memory_space<vmem>>, vector<1x64xf32>
    %c1_24 = arith.constant 1 : index
    %c0_25 = arith.constant 0 : index
    %28 = vector.load %arg8[%c1_24, %c0_25] : memref<18x64xf32, #tpu.memory_space<vmem>>, vector<16x64xf32>
    tpu.vector_store %arg8[%c1_24, %c0_25], %26 {strides = array<i32>} : memref<18x64xf32, #tpu.memory_space<vmem>>, vector<16x64xf32>,
    %29 = vector.shape_cast %27 : vector<1x64xf32> to vector<1x64xf32>
    %30 = vector.broadcast %29 : vector<1x64xf32> to vector<16x64xf32>
    %c0_26 = arith.constant 0 : index
    %c0_27 = arith.constant 0 : index
    %31 = vector.load %arg8[%c0_26, %c0_27] : memref<18x64xf32, #tpu.memory_space<vmem>>, vector<16x64xf32>
    %c0_28 = arith.constant 0 : index
    %c0_29 = arith.constant 0 : index
    %32 = vector.load %arg4[%c0_28, %c0_29] : memref<192x64xf32, #tpu.memory_space<vmem>>, vector<64x64xf32>
    %cst_30 = arith.constant dense<0.000000e+00> : vector<16x64xf32>
    %33 = tpu.matmul %31, %32, %cst_30 {dimension_numbers = #tpu.dot_dimension_numbers<[1], [0], [0], [1], [0, 0, 1, 1], [], []>} : vector<16x64xf32>, vector<64x64xf32>, vector<16x64xf32> -> vector<16x64xf32>
    %34 = arith.addf %30, %33 : vector<16x64xf32>
    %c1_31 = arith.constant 1 : index
    %c0_32 = arith.constant 0 : index
    %35 = vector.load %arg8[%c1_31, %c0_32] : memref<18x64xf32, #tpu.memory_space<vmem>>, vector<16x64xf32>
    %c64_33 = arith.constant 64 : index
    %c0_34 = arith.constant 0 : index
    %36 = vector.load %arg4[%c64_33, %c0_34] : memref<192x64xf32, #tpu.memory_space<vmem>>, vector<64x64xf32>
    %cst_35 = arith.constant dense<0.000000e+00> : vector<16x64xf32>
    %37 = tpu.matmul %35, %36, %cst_35 {dimension_numbers = #tpu.dot_dimension_numbers<[1], [0], [0], [1], [0, 0, 1, 1], [], []>} : vector<16x64xf32>, vector<64x64xf32>, vector<16x64xf32> -> vector<16x64xf32>
    %38 = arith.addf %34, %37 : vector<16x64xf32>
    %c2_36 = arith.constant 2 : index
    %c0_37 = arith.constant 0 : index
    %39 = vector.load %arg8[%c2_36, %c0_37] : memref<18x64xf32, #tpu.memory_space<vmem>>, vector<16x64xf32>
    %c128_38 = arith.constant 128 : index
    %c0_39 = arith.constant 0 : index
    %40 = vector.load %arg4[%c128_38, %c0_39] : memref<192x64xf32, #tpu.memory_space<vmem>>, vector<64x64xf32>
    %cst_40 = arith.constant dense<0.000000e+00> : vector<16x64xf32>
    %41 = tpu.matmul %39, %40, %cst_40 {dimension_numbers = #tpu.dot_dimension_numbers<[1], [0], [0], [1], [0, 0, 1, 1], [], []>} : vector<16x64xf32>, vector<64x64xf32>, vector<16x64xf32> -> vector<16x64xf32>
    %42 = arith.addf %38, %41 : vector<16x64xf32>
    %43 = arith.addf %42, %1 : vector<16x64xf32>
    %c0_41 = arith.constant 0 : index
    %c0_42 = arith.constant 0 : index
    %c0_43 = arith.constant 0 : index
    %44 = vector.load %arg7[%c0_41, %c0_42, %c0_43] : memref<1x16x64xf32, #tpu.memory_space<vmem>>, vector<1x16x64xf32>
    %45 = vector.shape_cast %44 : vector<1x16x64xf32> to vector<16x64xf32>
    %46 = vector.shape_cast %43 : vector<16x64xf32> to vector<1x16x64xf32>
    tpu.vector_store %arg7[%c0_41, %c0_42, %c0_43], %46 {strides = array<i32>} : memref<1x16x64xf32, #tpu.memory_space<vmem>>, vector<1x16x64xf32>,
    return
  }
  func.func @transform_0(%arg0: i32) -> (i32, i32, i32) {
    %c0_i32 = arith.constant 0 : i32
    %c0_i32_0 = arith.constant 0 : i32
    %c0_i32_1 = arith.constant 0 : i32
    return %arg0, %c0_i32, %c0_i32_0 : i32, i32, i32
  }
  func.func @transform_1(%arg0: i32) -> (i32, i32) {
    %c0_i32 = arith.constant 0 : i32
    %c0_i32_0 = arith.constant 0 : i32
    %c0_i32_1 = arith.constant 0 : i32
    return %c0_i32, %c0_i32_0 : i32, i32
  }
  func.func @transform_2(%arg0: i32) -> (i32, i32) {
    %c0_i32 = arith.constant 0 : i32
    %c0_i32_0 = arith.constant 0 : i32
    %c0_i32_1 = arith.constant 0 : i32
    return %c0_i32, %c0_i32_0 : i32, i32
  }
  func.func @transform_3(%arg0: i32) -> (i32, i32) {
    %c0_i32 = arith.constant 0 : i32
    %c0_i32_0 = arith.constant 0 : i32
    %c0_i32_1 = arith.constant 0 : i32
    return %c0_i32, %c0_i32_0 : i32, i32
  }
  func.func @transform_4(%arg0: i32) -> (i32, i32) {
    %c0_i32 = arith.constant 0 : i32
    %c0_i32_0 = arith.constant 0 : i32
    %c0_i32_1 = arith.constant 0 : i32
    return %c0_i32, %c0_i32_0 : i32, i32
  }
  func.func @transform_5(%arg0: i32) -> i32 {
    %c0_i32 = arith.constant 0 : i32
    %c0_i32_0 = arith.constant 0 : i32
    return %c0_i32 : i32
  }
  func.func @transform_6(%arg0: i32) -> (i32, i32, i32) {
    %c0_i32 = arith.constant 0 : i32
    %c0_i32_0 = arith.constant 0 : i32
    %c0_i32_1 = arith.constant 0 : i32
    return %arg0, %c0_i32, %c0_i32_0 : i32, i32, i32
  }
}

</mosaic_0001>

<llo_original>
// kernel: tpu_custom_call.1
$region0: #{tpu_custom_call.1}
  #allocation0 [shape = 'u32[]', space=smem, size = 0x4, offset = 0x4, fixed_abs, tag = 'smem constant byte address 0x4 - core index']
  #allocation1 [shape = 'u32[72,128]{1,0:T(1,128)}', space=vmem, size = 0x9000, scoped, tag = 'internal scratch']
  #allocation2 [shape = 'f32[18,64]{1,0:T(8,128)}', space=vmem, size = 0x3000, scoped, tag = 'scratch operand']
  #allocation3 [shape = 'f32[1]{0:T(128)S(6)}', space=smem, size = 0x200, scoped, tag = 'scoped memory for tpu_custom_call.1']
  %s0 = inlined_call_operand.vmem [shape: f32[2,16,64], index: 0, kind: input, shape index: {}]
  %s1 = inlined_call_operand.vmem [shape: f32[192,64], index: 1, kind: input, shape index: {}]
  %s2 = inlined_call_operand.vmem [shape: f32[1,64], index: 2, kind: input, shape index: {}]
  %s3 = inlined_call_operand.vmem [shape: f32[192,64], index: 3, kind: input, shape index: {}]
  %s4 = inlined_call_operand.vmem [shape: f32[1,64], index: 4, kind: input, shape index: {}]
  %s5 = inlined_call_operand.<no memory space> [shape: f32[1], index: 5, kind: input, shape index: {}]
  %s6 = inlined_call_operand.hbm [shape: f32[2,16,64], index: 6, kind: output, shape index: {}]
  %s7 = sld [smem:[#allocation0]]
  $region57: #{tpu_custom_call.1} parent=0
    _
  %s9 = ssub.s32 1, %s7
  %s10 = scalar_select 0, %s9, %s7
  %11 = sst [smem:[#allocation3]] %s5
  $region1: #{tpu_custom_call.1} parent=0
    #allocation4 [shape = 'u8[16384]{0}', space=vmem, size = 0x4000, scoped, tag = 'output window, operand 0']
    #allocation5 [shape = 's32[2]{0}', space=sflag, size = 0x8, scoped, tag = 'scoped memory for tpu_custom_call.1']
    %12 = vsyncpa [#allocation5], 0
    %s13 = scalar_lea.sflag [#allocation5], 1
    %14 = vsyncpa %s13, 0
    loop: start=0, step=1, limit=4
    $region2: #{tpu_custom_call.1} parent=1 // loop_pre_header
      _
    $region3: #{tpu_custom_call.1} parent=1 // loop_header
      %s16 = sphi 0, %s20
      %p17 = scmp.ge.s32.totalorder %s16, 4
      %s26 = sphi 0, %s28
      %s29 = sphi 0, %s26
      %s30 = sphi 0, %s29
      %s46 = sphi 0, %s30
      %s50 = sphi 0, %s50
      %s52 = sphi 0, %s50
      %s53 = sphi 0, %s52
      %s67 = sphi 0, %s53
      %s71 = sphi 0, %s71
      %s73 = sphi 0, %s71
      %s74 = sphi 0, %s73
      %s88 = sphi 0, %s74
      %s92 = sphi 0, %s92
      %s94 = sphi 0, %s92
      %s95 = sphi 0, %s94
      %s109 = sphi 0, %s95
      %s113 = sphi 0, %s113
      %s115 = sphi 0, %s113
      %s116 = sphi 0, %s115
      %s130 = sphi 0, %s116
      %s134 = sphi 0, %s134
      %s136 = sphi 0, %s134
      %s137 = sphi 0, %s136
      %s151 = sphi 0, %s137
      %s157 = sphi 0, %s159
      %s160 = sphi 0, %s157
      %s161 = sphi 0, %s160
      %s177 = sphi 0, %s161
    $region4: #{tpu_custom_call.1} parent=1 // loop_header_branch
      %19 = sbr.rel (%p17) target = $region8
    $region5: #{tpu_custom_call.1} parent=1 // loop_body
      %s21 = ssub.s32 %s16, 1
      %s22 = ssub.s32 %s16, 2
      %s23 = sadd.s32 %s16, 1
      %s24 = ssub.s32 %s16, %s23
      %p25 = scmp.eq.s32.totalorder %s24, 0
      %s27 = sadd.s32 %s26, 1
      %s28 = scalar_select %p25, %s26, %s27
      %p31 = pneg %p25
      %p32 = scmp.eq.s32.totalorder %s16, 1
      %p33 = por %p31, %p32
      %p34 = scmp.ne.s32.totalorder %s26, %s29
      %p35 = scmp.eq.s32.totalorder %s16, 0
      %p36 = por %p34, %p35
      %p37 = scmp.ne.s32.totalorder %s26, %s29
      %p38 = scmp.eq.s32.totalorder %s21, 1
      %p39 = por %p37, %p38
      %p40 = scmp.ne.s32.totalorder %s29, %s30
      %p41 = scmp.eq.s32.totalorder %s21, 0
      %p42 = por %p40, %p41
      %p43 = scmp.ne.s32.totalorder %s29, %s30
      %p44 = scmp.eq.s32.totalorder %s22, 1
      %p45 = por %p43, %p44
      %p47 = scmp.ne.s32.totalorder %s30, %s46
      %p48 = scmp.eq.s32.totalorder %s22, 0
      %p49 = por %p47, %p48
      %s51 = sadd.s32 %s50, 1
      %p54 = scmp.eq.s32.totalorder %s16, 1
      %p55 = scmp.ne.s32.totalorder %s50, %s52
      %p56 = scmp.eq.s32.totalorder %s16, 0
      %p57 = por %p55, %p56
      %p58 = scmp.ne.s32.totalorder %s50, %s52
      %p59 = scmp.eq.s32.totalorder %s21, 1
      %p60 = por %p58, %p59
      %p61 = scmp.ne.s32.totalorder %s52, %s53
      %p62 = scmp.eq.s32.totalorder %s21, 0
      %p63 = por %p61, %p62
      %p64 = scmp.ne.s32.totalorder %s52, %s53
      %p65 = scmp.eq.s32.totalorder %s22, 1
      %p66 = por %p64, %p65
      %p68 = scmp.ne.s32.totalorder %s53, %s67
      %p69 = scmp.eq.s32.totalorder %s22, 0
      %p70 = por %p68, %p69
      %s72 = sadd.s32 %s71, 1
      %p75 = scmp.eq.s32.totalorder %s16, 1
      %p76 = scmp.ne.s32.totalorder %s71, %s73
      %p77 = scmp.eq.s32.totalorder %s16, 0
      %p78 = por %p76, %p77
      %p79 = scmp.ne.s32.totalorder %s71, %s73
      %p80 = scmp.eq.s32.totalorder %s21, 1
      %p81 = por %p79, %p80
      %p82 = scmp.ne.s32.totalorder %s73, %s74
      %p83 = scmp.eq.s32.totalorder %s21, 0
      %p84 = por %p82, %p83
      %p85 = scmp.ne.s32.totalorder %s73, %s74
      %p86 = scmp.eq.s32.totalorder %s22, 1
      %p87 = por %p85, %p86
      %p89 = scmp.ne.s32.totalorder %s74, %s88
      %p90 = scmp.eq.s32.totalorder %s22, 0
      %p91 = por %p89, %p90
      %s93 = sadd.s32 %s92, 1
      %p96 = scmp.eq.s32.totalorder %s16, 1
      %p97 = scmp.ne.s32.totalorder %s92, %s94
      %p98 = scmp.eq.s32.totalorder %s16, 0
      %p99 = por %p97, %p98
      %p100 = scmp.ne.s32.totalorder %s92, %s94
      %p101 = scmp.eq.s32.totalorder %s21, 1
      %p102 = por %p100, %p101
      %p103 = scmp.ne.s32.totalorder %s94, %s95
      %p104 = scmp.eq.s32.totalorder %s21, 0
      %p105 = por %p103, %p104
      %p106 = scmp.ne.s32.totalorder %s94, %s95
      %p107 = scmp.eq.s32.totalorder %s22, 1
      %p108 = por %p106, %p107
      %p110 = scmp.ne.s32.totalorder %s95, %s109
      %p111 = scmp.eq.s32.totalorder %s22, 0
      %p112 = por %p110, %p111
      %s114 = sadd.s32 %s113, 1
      %p117 = scmp.eq.s32.totalorder %s16, 1
      %p118 = scmp.ne.s32.totalorder %s113, %s115
      %p119 = scmp.eq.s32.totalorder %s16, 0
      %p120 = por %p118, %p119
      %p121 = scmp.ne.s32.totalorder %s113, %s115
      %p122 = scmp.eq.s32.totalorder %s21, 1
      %p123 = por %p121, %p122
      %p124 = scmp.ne.s32.totalorder %s115, %s116
      %p125 = scmp.eq.s32.totalorder %s21, 0
      %p126 = por %p124, %p125
      %p127 = scmp.ne.s32.totalorder %s115, %s116
      %p128 = scmp.eq.s32.totalorder %s22, 1
      %p129 = por %p127, %p128
      %p131 = scmp.ne.s32.totalorder %s116, %s130
      %p132 = scmp.eq.s32.totalorder %s22, 0
      %p133 = por %p131, %p132
      %s135 = sadd.s32 %s134, 1
      %p138 = scmp.eq.s32.totalorder %s16, 1
      %p139 = scmp.ne.s32.totalorder %s134, %s136
      %p140 = scmp.eq.s32.totalorder %s16, 0
      %p141 = por %p139, %p140
      %p142 = scmp.ne.s32.totalorder %s134, %s136
      %p143 = scmp.eq.s32.totalorder %s21, 1
      %p144 = por %p142, %p143
      %p145 = scmp.ne.s32.totalorder %s136, %s137
      %p146 = scmp.eq.s32.totalorder %s21, 0
      %p147 = por %p145, %p146
      %p148 = scmp.ne.s32.totalorder %s136, %s137
      %p149 = scmp.eq.s32.totalorder %s22, 1
      %p150 = por %p148, %p149
      %p152 = scmp.ne.s32.totalorder %s137, %s151
      %p153 = scmp.eq.s32.totalorder %s22, 0
      %p154 = por %p152, %p153
      %s155 = ssub.s32 %s16, %s23
      %p156 = scmp.eq.s32.totalorder %s155, 0
      %s158 = sadd.s32 %s157, 1
      %s159 = scalar_select %p156, %s157, %s158
      %p162 = pneg %p156
      %p163 = scmp.eq.s32.totalorder %s16, 1
      %p164 = por %p162, %p163
      %p165 = scmp.ne.s32.totalorder %s157, %s160
      %p166 = scmp.eq.s32.totalorder %s16, 0
      %p167 = por %p165, %p166
      %p168 = scmp.ne.s32.totalorder %s157, %s160
      %p169 = scmp.eq.s32.totalorder %s21, 1
      %p170 = por %p168, %p169
      %p171 = scmp.ne.s32.totalorder %s160, %s161
      %p172 = scmp.eq.s32.totalorder %s21, 0
      %p173 = por %p171, %p172
      %p174 = scmp.ne.s32.totalorder %s160, %s161
      %p175 = scmp.eq.s32.totalorder %s22, 1
      %p176 = por %p174, %p175
      %p178 = scmp.ne.s32.totalorder %s161, %s177
      %p179 = scmp.eq.s32.totalorder %s22, 0
      %p180 = por %p178, %p179
      %p181 = scmp.le.s32.totalorder 1, %s16
      %p182 = scmp.lt.s32.totalorder %s16, 3
      %p183 = pnand %p181, %p182
      %p184 = pneg %p183
      // Predicated region
      $region9: #{tpu_custom_call.1} parent=5 // pred_check
        _
      $region10: #{tpu_custom_call.1} parent=5 // pred_check_branch
        %186 = sbr.rel (%p183) target = $region12
      $region11: #{tpu_custom_call.1} parent=5 // pred_region
        %s187 = ssub.s32 %s16, 1
        // Predicated region
        $region13: #{tpu_custom_call.1} parent=11 // pred_check
          %p188 = pneg %p63
        $region14: #{tpu_custom_call.1} parent=11 // pred_check_branch
          %190 = sbr.rel (%p188) target = $region16
        $region15: #{tpu_custom_call.1} parent=11 // pred_region
          _
        $region16: #{tpu_custom_call.1} parent=11 // pred_fallthru
          _
        // Predicated region
        $region17: #{tpu_custom_call.1} parent=11 // pred_check
          %p191 = pneg %p84
        $region18: #{tpu_custom_call.1} parent=11 // pred_check_branch
          %193 = sbr.rel (%p191) target = $region20
        $region19: #{tpu_custom_call.1} parent=11 // pred_region
          _
        $region20: #{tpu_custom_call.1} parent=11 // pred_fallthru
          _
        // Predicated region
        $region21: #{tpu_custom_call.1} parent=11 // pred_check
          %p194 = pneg %p105
        $region22: #{tpu_custom_call.1} parent=11 // pred_check_branch
          %196 = sbr.rel (%p194) target = $region24
        $region23: #{tpu_custom_call.1} parent=11 // pred_region
          _
        $region24: #{tpu_custom_call.1} parent=11 // pred_fallthru
          _
        // Predicated region
        $region25: #{tpu_custom_call.1} parent=11 // pred_check
          %p197 = pneg %p126
        $region26: #{tpu_custom_call.1} parent=11 // pred_check_branch
          %199 = sbr.rel (%p197) target = $region28
        $region27: #{tpu_custom_call.1} parent=11 // pred_region
          _
        $region28: #{tpu_custom_call.1} parent=11 // pred_fallthru
          _
        // Predicated region
        $region29: #{tpu_custom_call.1} parent=11 // pred_check
          %p200 = pneg %p147
        $region30: #{tpu_custom_call.1} parent=11 // pred_check_branch
          %202 = sbr.rel (%p200) target = $region32
        $region31: #{tpu_custom_call.1} parent=11 // pred_region
          _
        $region32: #{tpu_custom_call.1} parent=11 // pred_fallthru
          _
      $region12: #{tpu_custom_call.1} parent=5 // pred_fallthru
        _
      %p203 = scmp.lt.s32.totalorder %s16, 2
      // Predicated region
      $region33: #{tpu_custom_call.1} parent=5 // pred_check
        %p204 = pneg %p203
      $region34: #{tpu_custom_call.1} parent=5 // pred_check_branch
        %206 = sbr.rel (%p204) target = $region36
      $region35: #{tpu_custom_call.1} parent=5 // pred_region
        // Predicated region
        $region37: #{tpu_custom_call.1} parent=35 // pred_check
          %p207 = pneg %p36
        $region38: #{tpu_custom_call.1} parent=35 // pred_check_branch
          %209 = sbr.rel (%p207) target = $region40
        $region39: #{tpu_custom_call.1} parent=35 // pred_region
          %p210 = scmp.lt.s32.totalorder %s16, 1
          %s211 = scalar_select %p210, %s16, 1
          %s212 = smul.addr %s211, 2
          %s213 = smul.addr %s212, 8
          %s214 = scalar_lea.vmem %s0, %s213
        $region40: #{tpu_custom_call.1} parent=35 // pred_fallthru
          _
      $region36: #{tpu_custom_call.1} parent=5 // pred_fallthru
        _
      %p215 = scmp.le.s32.totalorder 1, %s16
      %p216 = scmp.lt.s32.totalorder %s16, 3
      %p217 = pnand %p215, %p216
      %p218 = pneg %p217
      // Predicated region
      $region41: #{tpu_custom_call.1} parent=5 // pred_check
        _
      $region42: #{tpu_custom_call.1} parent=5 // pred_check_branch
        %220 = sbr.rel (%p217) target = $region44
      $region43: #{tpu_custom_call.1} parent=5 // pred_region
        %s221 = ssub.s32 %s16, 1
        %p222 = scmp.lt.s32.totalorder %s21, 1
        %s223 = scalar_select %p222, %s21, 1
        %s224 = smul.addr %s223, 2
        %s225 = smul.addr %s224, 8
        %s226 = scalar_lea.vmem %s0, %s225
        %p227 = pneg %p42
        %p228 = pneg %p39
        %p229 = pneg %p63
        %p230 = pneg %p60
        %p231 = pneg %p84
        %p232 = pneg %p81
        %p233 = pneg %p105
        %p234 = pneg %p102
        %p235 = pneg %p126
        %p236 = pneg %p123
        %p237 = pneg %p147
        %p238 = pneg %p144
        %p239 = pneg %p173
        %p240 = pneg %p170
        %s241 = sand.u32 %s160, 1
        %s242 = scalar_lea.sflag [#allocation5], %s241
        %s243 = sand.u32 %s160, 1
        %s244 = smul.addr %s243, 16
        %s245 = scalar_lea.vmem [#allocation4], %s244
        %p246 = scmp.lt.s32.totalorder %s21, 1
        %s247 = scalar_select %p246, %s21, 1
        %s248 = smul.addr %s247, 2
        %s249 = smul.addr %s248, 8
        %s250 = scalar_lea.vmem %s0, %s249
        %v251 = vld [vmem:[%s250] sm:$0xff]
        %v252 = vld [vmem:[%s250 + $0x8] sm:$0xff]
        %vm253 = vcmask 516096
        %254 = vst.msk [vmem:[#allocation2] sm:$0x1] %vm253, 0.0
        %255 = vst.msk [vmem:[#allocation2 + $0x11] sm:$0x1] %vm253, 0.0
        %s256 = sld [smem:[#allocation3]]
        %v257 = vld [vmem:[%s2] sm:$0x1]
        %vm258 = vcmask 523264
        %259 = vst.msk [vmem:[#allocation2 + $0x1] sm:$0xff] %vm258, %v251
        %260 = vst.msk [vmem:[#allocation2 + $0x9] sm:$0xff] %vm258, %v252
        %v262 = vperm.slane %v257, 0
        %v264 = vld [vmem:[#allocation2] sm:$0xff]
        %v265 = vld [vmem:[#allocation2 + $0x8] sm:$0xff]
        %v266 = vld [vmem:[%s1] sm:$0xff]
        %v267 = vld [vmem:[%s1 + $0x8] sm:$0xff]
        %v268 = vld [vmem:[%s1 + $0x10] sm:$0xff]
        %v269 = vld [vmem:[%s1 + $0x18] sm:$0xff]
        %v270 = vld [vmem:[%s1 + $0x20] sm:$0xff]
        %v271 = vld [vmem:[%s1 + $0x28] sm:$0xff]
        %v272 = vld [vmem:[%s1 + $0x30] sm:$0xff]
        %v273 = vld [vmem:[%s1 + $0x38] sm:$0xff]
        %v275 = vsel %vm258, %v264, 0
        %v278 = vsel %vm258, %v265, 0
        %280 = vmatpush.msra.mxu0 0.0
        %281 = vmatpush.msra.mxu0 0.0
        %282 = vmatpush.msra.mxu0 0.0
        %283 = vmatpush.msra.mxu0 0.0
        %284 = vmatpush.msra.mxu0 0.0
        %285 = vmatpush.msra.mxu0 0.0
        %286 = vmatpush.msra.mxu0 0.0
        %287 = vmatpush.msra.mxu0 0.0
        %288 = vmatpush.msra.mxu0 %v273
        %289 = vmatpush.msra.mxu0 %v272
        %290 = vmatpush.msra.mxu0 %v271
        %291 = vmatpush.msra.mxu0 %v270
        %292 = vmatpush.msra.mxu0 %v269
        %293 = vmatpush.msra.mxu0 %v268
        %294 = vmatpush.msra.mxu0 %v267
        %295 = vmatpush.msra.mxu0 %v266
        %296 = vmatmul.f32.gmra.mxu0 %v275
        %v297 = vpop.f32.mrf.mxu0
        %v298 = vadd.f32 0.0, %v297
        %299 = vmatmul.f32.gmra.mxu0 %v278
        %v300 = vpop.f32.mrf.mxu0
        %v301 = vadd.f32 0.0, %v300
        %302 = vdwg.mxu0
        %v303 = vadd.f32 %v262, %v298
        %v304 = vadd.f32 %v262, %v301
        %v305 = vld [vmem:[#allocation2 + $0x1] sm:$0xff]
        %v306 = vld [vmem:[#allocation2 + $0x9] sm:$0xff]
        %v307 = vld [vmem:[%s1 + $0x40] sm:$0xff]
        %v308 = vld [vmem:[%s1 + $0x48] sm:$0xff]
        %v309 = vld [vmem:[%s1 + $0x50] sm:$0xff]
        %v310 = vld [vmem:[%s1 + $0x58] sm:$0xff]
        %v311 = vld [vmem:[%s1 + $0x60] sm:$0xff]
        %v312 = vld [vmem:[%s1 + $0x68] sm:$0xff]
        %v313 = vld [vmem:[%s1 + $0x70] sm:$0xff]
        %v314 = vld [vmem:[%s1 + $0x78] sm:$0xff]
        %v316 = vsel %vm258, %v305, 0
        %v319 = vsel %vm258, %v306, 0
        %321 = vmatpush.msra.mxu0 0.0
        %322 = vmatpush.msra.mxu0 0.0
        %323 = vmatpush.msra.mxu0 0.0
        %324 = vmatpush.msra.mxu0 0.0
        %325 = vmatpush.msra.mxu0 0.0
        %326 = vmatpush.msra.mxu0 0.0
        %327 = vmatpush.msra.mxu0 0.0
        %328 = vmatpush.msra.mxu0 0.0
        %329 = vmatpush.msra.mxu0 %v314
        %330 = vmatpush.msra.mxu0 %v313
        %331 = vmatpush.msra.mxu0 %v312
        %332 = vmatpush.msra.mxu0 %v311
        %333 = vmatpush.msra.mxu0 %v310
        %334 = vmatpush.msra.mxu0 %v309
        %335 = vmatpush.msra.mxu0 %v308
        %336 = vmatpush.msra.mxu0 %v307
        %337 = vmatmul.f32.gmra.mxu0 %v316
        %v338 = vpop.f32.mrf.mxu0
        %v339 = vadd.f32 0.0, %v338
        %340 = vmatmul.f32.gmra.mxu0 %v319
        %v341 = vpop.f32.mrf.mxu0
        %v342 = vadd.f32 0.0, %v341
        %343 = vdwg.mxu0
        %v344 = vadd.f32 %v303, %v339
        %v345 = vadd.f32 %v304, %v342
        %v346 = vld [vmem:[#allocation2 + $0x2] sm:$0xff]
        %v347 = vld [vmem:[#allocation2 + $0xa] sm:$0xff]
        %v348 = vld [vmem:[%s1 + $0x80] sm:$0xff]
        %v349 = vld [vmem:[%s1 + $0x88] sm:$0xff]
        %v350 = vld [vmem:[%s1 + $0x90] sm:$0xff]
        %v351 = vld [vmem:[%s1 + $0x98] sm:$0xff]
        %v352 = vld [vmem:[%s1 + $0xa0] sm:$0xff]
        %v353 = vld [vmem:[%s1 + $0xa8] sm:$0xff]
        %v354 = vld [vmem:[%s1 + $0xb0] sm:$0xff]
        %v355 = vld [vmem:[%s1 + $0xb8] sm:$0xff]
        %v357 = vsel %vm258, %v346, 0
        %v360 = vsel %vm258, %v347, 0
        %362 = vmatpush.msra.mxu0 0.0
        %363 = vmatpush.msra.mxu0 0.0
        %364 = vmatpush.msra.mxu0 0.0
        %365 = vmatpush.msra.mxu0 0.0
        %366 = vmatpush.msra.mxu0 0.0
        %367 = vmatpush.msra.mxu0 0.0
        %368 = vmatpush.msra.mxu0 0.0
        %369 = vmatpush.msra.mxu0 0.0
        %370 = vmatpush.msra.mxu0 %v355
        %371 = vmatpush.msra.mxu0 %v354
        %372 = vmatpush.msra.mxu0 %v353
        %373 = vmatpush.msra.mxu0 %v352
        %374 = vmatpush.msra.mxu0 %v351
        %375 = vmatpush.msra.mxu0 %v350
        %376 = vmatpush.msra.mxu0 %v349
        %377 = vmatpush.msra.mxu0 %v348
        %378 = vmatmul.f32.gmra.mxu0 %v357
        %v379 = vpop.f32.mrf.mxu0
        %v380 = vadd.f32 0.0, %v379
        %381 = vmatmul.f32.gmra.mxu0 %v360
        %v382 = vpop.f32.mrf.mxu0
        %v383 = vadd.f32 0.0, %v382
        %384 = vdwg.mxu0
        %v385 = vadd.f32 %v344, %v380
        %v386 = vadd.f32 %v345, %v383
        %vm387 = vcmp.gt.f32.partialorder %v385, 0.0
        %vm388 = vcmp.gt.f32.partialorder %v386, 0.0
        %v389 = vstv %s256
        %v390 = vmul.f32 %v389, %v385
        %v391 = vmul.f32 %v389, %v386
        %v392 = vsel %vm387, %v385, %v390
        %v393 = vsel %vm388, %v386, %v391
        %v394 = vld [vmem:[%s4] sm:$0x1]
        %395 = vst.msk [vmem:[#allocation2 + $0x1] sm:$0xff] %vm258, %v392
        %396 = vst.msk [vmem:[#allocation2 + $0x9] sm:$0xff] %vm258, %v393
        %v398 = vperm.slane %v394, 0
        %v400 = vld [vmem:[#allocation2] sm:$0xff]
        %v401 = vld [vmem:[#allocation2 + $0x8] sm:$0xff]
        %v402 = vld [vmem:[%s3] sm:$0xff]
        %v403 = vld [vmem:[%s3 + $0x8] sm:$0xff]
        %v404 = vld [vmem:[%s3 + $0x10] sm:$0xff]
        %v405 = vld [vmem:[%s3 + $0x18] sm:$0xff]
        %v406 = vld [vmem:[%s3 + $0x20] sm:$0xff]
        %v407 = vld [vmem:[%s3 + $0x28] sm:$0xff]
        %v408 = vld [vmem:[%s3 + $0x30] sm:$0xff]
        %v409 = vld [vmem:[%s3 + $0x38] sm:$0xff]
        %v411 = vsel %vm258, %v400, 0
        %v414 = vsel %vm258, %v401, 0
        %416 = vmatpush.msra.mxu0 0.0
        %417 = vmatpush.msra.mxu0 0.0
        %418 = vmatpush.msra.mxu0 0.0
        %419 = vmatpush.msra.mxu0 0.0
        %420 = vmatpush.msra.mxu0 0.0
        %421 = vmatpush.msra.mxu0 0.0
        %422 = vmatpush.msra.mxu0 0.0
        %423 = vmatpush.msra.mxu0 0.0
        %424 = vmatpush.msra.mxu0 %v409
        %425 = vmatpush.msra.mxu0 %v408
        %426 = vmatpush.msra.mxu0 %v407
        %427 = vmatpush.msra.mxu0 %v406
        %428 = vmatpush.msra.mxu0 %v405
        %429 = vmatpush.msra.mxu0 %v404
        %430 = vmatpush.msra.mxu0 %v403
        %431 = vmatpush.msra.mxu0 %v402
        %432 = vmatmul.f32.gmra.mxu0 %v411
        %v433 = vpop.f32.mrf.mxu0
        %v434 = vadd.f32 0.0, %v433
        %435 = vmatmul.f32.gmra.mxu0 %v414
        %v436 = vpop.f32.mrf.mxu0
        %v437 = vadd.f32 0.0, %v436
        %438 = vdwg.mxu0
        %v439 = vadd.f32 %v398, %v434
        %v440 = vadd.f32 %v398, %v437
        %v441 = vld [vmem:[#allocation2 + $0x1] sm:$0xff]
        %v442 = vld [vmem:[#allocation2 + $0x9] sm:$0xff]
        %v443 = vld [vmem:[%s3 + $0x40] sm:$0xff]
        %v444 = vld [vmem:[%s3 + $0x48] sm:$0xff]
        %v445 = vld [vmem:[%s3 + $0x50] sm:$0xff]
        %v446 = vld [vmem:[%s3 + $0x58] sm:$0xff]
        %v447 = vld [vmem:[%s3 + $0x60] sm:$0xff]
        %v448 = vld [vmem:[%s3 + $0x68] sm:$0xff]
        %v449 = vld [vmem:[%s3 + $0x70] sm:$0xff]
        %v450 = vld [vmem:[%s3 + $0x78] sm:$0xff]
        %v452 = vsel %vm258, %v441, 0
        %v455 = vsel %vm258, %v442, 0
        %457 = vmatpush.msra.mxu0 0.0
        %458 = vmatpush.msra.mxu0 0.0
        %459 = vmatpush.msra.mxu0 0.0
        %460 = vmatpush.msra.mxu0 0.0
        %461 = vmatpush.msra.mxu0 0.0
        %462 = vmatpush.msra.mxu0 0.0
        %463 = vmatpush.msra.mxu0 0.0
        %464 = vmatpush.msra.mxu0 0.0
        %465 = vmatpush.msra.mxu0 %v450
        %466 = vmatpush.msra.mxu0 %v449
        %467 = vmatpush.msra.mxu0 %v448
        %468 = vmatpush.msra.mxu0 %v447
        %469 = vmatpush.msra.mxu0 %v446
        %470 = vmatpush.msra.mxu0 %v445
        %471 = vmatpush.msra.mxu0 %v444
        %472 = vmatpush.msra.mxu0 %v443
        %473 = vmatmul.f32.gmra.mxu0 %v452
        %v474 = vpop.f32.mrf.mxu0
        %v475 = vadd.f32 0.0, %v474
        %476 = vmatmul.f32.gmra.mxu0 %v455
        %v477 = vpop.f32.mrf.mxu0
        %v478 = vadd.f32 0.0, %v477
        %479 = vdwg.mxu0
        %v480 = vadd.f32 %v439, %v475
        %v481 = vadd.f32 %v440, %v478
        %v482 = vld [vmem:[#allocation2 + $0x2] sm:$0xff]
        %v483 = vld [vmem:[#allocation2 + $0xa] sm:$0xff]
        %v484 = vld [vmem:[%s3 + $0x80] sm:$0xff]
        %v485 = vld [vmem:[%s3 + $0x88] sm:$0xff]
        %v486 = vld [vmem:[%s3 + $0x90] sm:$0xff]
        %v487 = vld [vmem:[%s3 + $0x98] sm:$0xff]
        %v488 = vld [vmem:[%s3 + $0xa0] sm:$0xff]
        %v489 = vld [vmem:[%s3 + $0xa8] sm:$0xff]
        %v490 = vld [vmem:[%s3 + $0xb0] sm:$0xff]
        %v491 = vld [vmem:[%s3 + $0xb8] sm:$0xff]
        %v493 = vsel %vm258, %v482, 0
        %v496 = vsel %vm258, %v483, 0
        %498 = vmatpush.msra.mxu0 0.0
        %499 = vmatpush.msra.mxu0 0.0
        %500 = vmatpush.msra.mxu0 0.0
        %501 = vmatpush.msra.mxu0 0.0
        %502 = vmatpush.msra.mxu0 0.0
        %503 = vmatpush.msra.mxu0 0.0
        %504 = vmatpush.msra.mxu0 0.0
        %505 = vmatpush.msra.mxu0 0.0
        %506 = vmatpush.msra.mxu0 %v491
        %507 = vmatpush.msra.mxu0 %v490
        %508 = vmatpush.msra.mxu0 %v489
        %509 = vmatpush.msra.mxu0 %v488
        %510 = vmatpush.msra.mxu0 %v487
        %511 = vmatpush.msra.mxu0 %v486
        %512 = vmatpush.msra.mxu0 %v485
        %513 = vmatpush.msra.mxu0 %v484
        %514 = vmatmul.f32.gmra.mxu0 %v493
        %v515 = vpop.f32.mrf.mxu0
        %v516 = vadd.f32 0.0, %v515
        %517 = vmatmul.f32.gmra.mxu0 %v496
        %v518 = vpop.f32.mrf.mxu0
        %v519 = vadd.f32 0.0, %v518
        %520 = vdwg.mxu0
        %v521 = vadd.f32 %v480, %v516
        %v522 = vadd.f32 %v481, %v519
        %v523 = vadd.f32 %v521, %v251
        %v524 = vadd.f32 %v522, %v252
        %525 = vst.msk [vmem:[%s245] sm:$0xff] %vm258, %v523
        %526 = vst.msk [vmem:[%s245 + $0x8] sm:$0xff] %vm258, %v524
        %s527 = sand.u32 %s160, 1
        %s528 = scalar_lea.sflag [#allocation5], %s527
        %s529 = sand.u32 %s160, 1
        %s530 = smul.addr %s529, 16
        %s531 = scalar_lea.vmem [#allocation4], %s530
        // Predicated region
        $region45: #{tpu_custom_call.1} parent=43 // pred_check
          %p532 = pneg %p170
        $region46: #{tpu_custom_call.1} parent=43 // pred_check_branch
          %534 = sbr.rel (%p532) target = $region48
        $region47: #{tpu_custom_call.1} parent=43 // pred_region
          %536 = vsyncadd %s528, 0
          %s537 = smul.addr %s21, 2
          %s538 = smul.addr %s537, 8
          %s539 = scalar_lea.hbm %s6, %s538
          %s540 = sshll.u32 %s531, 4
          %s541 = int_to_ptr.vmem [resolvable:$true] %s540
          %s542 = sshll.u32 %s539, 4
          %s543 = int_to_ptr.hbm [resolvable:$true] %s542
          %548 = dma.vmem_to_hbm [thread:$0]  %s541, 256, %s543, %s528, 128, 128, 8
        $region48: #{tpu_custom_call.1} parent=43 // pred_fallthru
          _
      $region44: #{tpu_custom_call.1} parent=5 // pred_fallthru
        _
      %p549 = scmp.le.s32.totalorder 2, %s16
      // Predicated region
      $region49: #{tpu_custom_call.1} parent=5 // pred_check
        %p550 = pneg %p549
      $region50: #{tpu_custom_call.1} parent=5 // pred_check_branch
        %552 = sbr.rel (%p550) target = $region52
      $region51: #{tpu_custom_call.1} parent=5 // pred_region
        %s553 = ssub.s32 %s16, 2
        // Predicated region
        $region53: #{tpu_custom_call.1} parent=51 // pred_check
          %p554 = pneg %p176
        $region54: #{tpu_custom_call.1} parent=51 // pred_check_branch
          %556 = sbr.rel (%p554) target = $region56
        $region55: #{tpu_custom_call.1} parent=51 // pred_region
          %s557 = sand.u32 %s161, 1
          %s558 = scalar_lea.sflag [#allocation5], %s557
          %s559 = sand.u32 %s161, 1
          %s560 = smul.addr %s559, 16
          %s561 = scalar_lea.vmem [#allocation4], %s560
          %563 = dma.done %s558, 256
        $region56: #{tpu_custom_call.1} parent=51 // pred_fallthru
          _
      $region52: #{tpu_custom_call.1} parent=5 // pred_fallthru
        _
    $region6: #{tpu_custom_call.1} parent=1 // loop_footer
      %s20 = sadd.s32 1, %s16
    $region7: #{tpu_custom_call.1} parent=1 // loop_footer_branch
      %15 = sbr.rel target = $region3
    $region8: #{tpu_custom_call.1} parent=1 // loop_exit
      _
    %564 = vsyncpa [#allocation5], 1
    %s565 = scalar_lea.sflag [#allocation5], 1
    %566 = vsyncpa %s565, 1

</llo_original>
